<compile_context>
chip_gen: v5e
topology: v5e:2x2
jax: 0.10.0
libtpu: 0.0.40
codegen_flags: <defaults>
</compile_context>

<pallas_src>
import functools

import jax
import jax.numpy as jnp
from jax.experimental import pallas as pl
from jax.experimental.pallas import tpu as pltpu

MIN_VALUE = -18.24
MAX_VALUE = 82.796


def linear_clamp_kernel(x_ref, w_ref, o_ref):
    """Computes clamp(x @ W^T + b) on the VPU.

    x_ref: SMEM (B, IN) f32   — read as scalars, splat into VPU multiplies.
    w_ref: VMEM (IN+1, OUT) f32 — rows 0..IN-1 are W^T rows, row IN is bias.
    o_ref: VMEM (B, OUT) f32
    """
    B, IN = x_ref.shape
    w = w_ref[...]                                 # (IN+1, OUT), single load
    bias = w[IN:IN + 1, :]                         # (1, OUT)
    for b in range(B):                             # trace-time unrolled (tiny B)
        y = bias
        for k in range(IN):                        # trace-time unrolled
            # scalar-from-SMEM * vector -> vector-scalar VPU FMA (free splat)
            y = y + x_ref[b, k] * w[k:k + 1, :]
        y = jnp.minimum(jnp.maximum(y, MIN_VALUE), MAX_VALUE)
        o_ref[b:b + 1, :] = y.astype(o_ref.dtype)


@jax.jit
def _linear_clamp_call(x, w_aug):
    B = x.shape[0]
    OUT = w_aug.shape[1]
    return pl.pallas_call(
        linear_clamp_kernel,
        out_shape=jax.ShapeDtypeStruct((B, OUT), jnp.float32),
        # No grid: single invocation, whole arrays resident on chip.
        in_specs=[
            pl.BlockSpec(memory_space=pltpu.MemorySpace.SMEM),   # x (scalars)
            pl.BlockSpec(memory_space=pltpu.MemorySpace.VMEM),   # w_aug
        ],
        out_specs=pl.BlockSpec(memory_space=pltpu.MemorySpace.VMEM),
    )(x, w_aug)


class LinearClamp:
    """Mirror of the torch Model: Linear(IN, OUT) followed by clamp.

    The augmented weight (W^T with bias appended as the last row) is built
    once here — hoisted out of the per-call path per the perf review.
    """

    def __init__(self, weight, bias):
        out_features, in_features = weight.shape     # torch layout: (OUT, IN)
        self.in_features = in_features
        self.out_features = out_features
        self.w_aug = jnp.concatenate(
            [weight.T.astype(jnp.float32),
             bias.reshape(1, out_features).astype(jnp.float32)],
            axis=0,
        )                                            # (IN+1, OUT)

    def __call__(self, x):
        assert x.ndim == 2 and x.shape[1] == self.in_features, (
            f"expected (B, {self.in_features}) input, got {x.shape}")
        assert self.w_aug.shape[0] == x.shape[1] + 1, "bias row missing in w_aug"
        return _linear_clamp_call(x.astype(jnp.float32), self.w_aug)


if __name__ == "__main__":
    key = jax.random.PRNGKey(0)
    kx, kw, kb = jax.random.split(key, 3)

    B, IN, OUT = 1, 3, 8
    # Deterministic synthetic parameters mirroring nn.Linear init bounds
    # (uniform in +/- 1/sqrt(in_features)); torch layout for W is (OUT, IN).
    bound = 1.0 / jnp.sqrt(jnp.float32(IN))
    weight = jax.random.uniform(kw, (OUT, IN), jnp.float32, -bound, bound)
    bias = jax.random.uniform(kb, (OUT,), jnp.float32, -bound, bound)

    x1 = jax.random.normal(kx, (B, IN), jnp.float32)

    model = LinearClamp(weight, bias)
    out = model(x1)
    jax.block_until_ready(out)

    # Reference check in plain JAX (matches the torch module semantics).
    ref = jnp.clip(x1 @ weight.T + bias, MIN_VALUE, MAX_VALUE)
    assert out.shape == (B, OUT)
    assert jnp.allclose(out, ref, atol=1e-5, rtol=1e-5)

    print("KERNEL_OK")
</pallas_src>

<mosaic_0001>
module attributes {stable_mosaic.version = 11 : i64} {
  func.func @linear_clamp_kernel(%arg0: memref<1x3xf32, #tpu.memory_space<smem>>, %arg1: memref<4x8xf32, #tpu.memory_space<vmem>>, %arg2: memref<1x8xf32, #tpu.memory_space<vmem>>) attributes {dimension_semantics = [], scalar_prefetch = 0 : i64, scratch_operands = 0 : i64, tpu.core_type = #tpu.core_type<tc>} {
    %c0 = arith.constant 0 : index
    %c0_0 = arith.constant 0 : index
    %0 = vector.load %arg1[%c0, %c0_0] : memref<4x8xf32, #tpu.memory_space<vmem>>, vector<4x8xf32>
    %1 = vector.extract_strided_slice %0 {offsets = [3, 0], sizes = [1, 8], strides = [1, 1]} : vector<4x8xf32> to vector<1x8xf32>
    %c0_1 = arith.constant 0 : index
    %c0_2 = arith.constant 0 : index
    %2 = memref.load %arg0[%c0_1, %c0_2] : memref<1x3xf32, #tpu.memory_space<smem>>
    %3 = vector.extract_strided_slice %0 {offsets = [0, 0], sizes = [1, 8], strides = [1, 1]} : vector<4x8xf32> to vector<1x8xf32>
    %4 = vector.broadcast %2 : f32 to vector<1x8xf32>
    %5 = arith.mulf %4, %3 : vector<1x8xf32>
    %6 = arith.addf %1, %5 : vector<1x8xf32>
    %c0_3 = arith.constant 0 : index
    %c1 = arith.constant 1 : index
    %7 = memref.load %arg0[%c0_3, %c1] : memref<1x3xf32, #tpu.memory_space<smem>>
    %8 = vector.extract_strided_slice %0 {offsets = [1, 0], sizes = [1, 8], strides = [1, 1]} : vector<4x8xf32> to vector<1x8xf32>
    %9 = vector.broadcast %7 : f32 to vector<1x8xf32>
    %10 = arith.mulf %9, %8 : vector<1x8xf32>
    %11 = arith.addf %6, %10 : vector<1x8xf32>
    %c0_4 = arith.constant 0 : index
    %c2 = arith.constant 2 : index
    %12 = memref.load %arg0[%c0_4, %c2] : memref<1x3xf32, #tpu.memory_space<smem>>
    %13 = vector.extract_strided_slice %0 {offsets = [2, 0], sizes = [1, 8], strides = [1, 1]} : vector<4x8xf32> to vector<1x8xf32>
    %14 = vector.broadcast %12 : f32 to vector<1x8xf32>
    %15 = arith.mulf %14, %13 : vector<1x8xf32>
    %16 = arith.addf %11, %15 : vector<1x8xf32>
    %cst = arith.constant -1.824000e+01 : f32
    %17 = vector.broadcast %cst : f32 to vector<1x8xf32>
    %18 = arith.maximumf %16, %17 : vector<1x8xf32>
    %cst_5 = arith.constant 8.279600e+01 : f32
    %19 = vector.broadcast %cst_5 : f32 to vector<1x8xf32>
    %20 = arith.minimumf %18, %19 : vector<1x8xf32>
    %c0_6 = arith.constant 0 : index
    %c0_7 = arith.constant 0 : index
    %21 = vector.load %arg2[%c0_6, %c0_7] : memref<1x8xf32, #tpu.memory_space<vmem>>, vector<1x8xf32>
    tpu.vector_store %arg2[%c0_6, %c0_7], %20 {strides = array<i32>} : memref<1x8xf32, #tpu.memory_space<vmem>>, vector<1x8xf32>,
    return
  }
}

</mosaic_0001>

<llo_original>
// kernel: _linear_clamp_call.1
$region0: #{_linear_clamp_call.1}
  #allocation0 [shape = 'u32[]', space=smem, size = 0x4, offset = 0x4, fixed_abs, tag = 'smem constant byte address 0x4 - core index']
  #allocation1 [shape = 'u32[72,128]{1,0:T(1,128)}', space=vmem, size = 0x9000, scoped, tag = 'internal scratch']
  %s0 = inlined_call_operand.hbm [shape: f32[1,3], index: 0, kind: input, shape index: {}]
  %s1 = inlined_call_operand.hbm [shape: f32[4,8], index: 1, kind: input, shape index: {}]
  %s2 = inlined_call_operand.hbm [shape: f32[1,8], index: 2, kind: output, shape index: {}]
  %s3 = sld [smem:[#allocation0]]
  $region26: #{_linear_clamp_call.1} parent=0
    _
  %s5 = ssub.s32 1, %s3
  %s6 = scalar_select 0, %s5, %s3
  $region1: #{_linear_clamp_call.1} parent=0
    #allocation2 [shape = 'u8[512]{0}', space=smem, size = 0x200, scoped, tag = 'input window, operand 0, single buffered']
    #allocation3 [shape = 's32[1]{0}', space=sflag, size = 0x4, scoped, tag = 'scoped memory for _linear_clamp_call.1']
    #allocation4 [shape = 's32[1]{0}', space=sflag, size = 0x4, scoped, tag = 'scoped memory for _linear_clamp_call.1']
    #allocation5 [shape = 's32[1]{0}', space=sflag, size = 0x4, scoped, tag = 'scoped memory for _linear_clamp_call.1']
    #allocation6 [shape = 'u8[2048]{0}', space=vmem, size = 0x800, scoped, tag = 'input window, operand 1, single buffered']
    #allocation7 [shape = 'u8[512]{0}', space=vmem, size = 0x400, scoped, tag = 'output window, operand 0, single buffered']
    %7 = vsyncpa [#allocation5], 0
    %8 = vsyncpa [#allocation3], 0
    %9 = vsyncpa [#allocation4], 0
    // Predicated region
    $region2: #{_linear_clamp_call.1} parent=1 // pred_check
      _
    $region3: #{_linear_clamp_call.1} parent=1 // pred_check_branch
      %11 = sbr.rel (0) target = $region5
    $region4: #{_linear_clamp_call.1} parent=1 // pred_region
      %13 = vsyncadd [#allocation5], 0
      %s15 = sshll.u32 %s0, 4
      %s16 = int_to_ptr.hbm [resolvable:$true] %s15
      %18 = dma.hbm_to_smem %s16, 16, [#allocation2], [#allocation5]
    $region5: #{_linear_clamp_call.1} parent=1 // pred_fallthru
      _
    // Predicated region
    $region6: #{_linear_clamp_call.1} parent=1 // pred_check
      _
    $region7: #{_linear_clamp_call.1} parent=1 // pred_check_branch
      %20 = sbr.rel (0) target = $region9
    $region8: #{_linear_clamp_call.1} parent=1 // pred_region
      %22 = vsyncadd [#allocation3], 0
      %s24 = sshll.u32 %s1, 4
      %s25 = int_to_ptr.hbm [resolvable:$true] %s24
      %s26 = sshll.u32 [#allocation6], 4
      %s27 = int_to_ptr.vmem [resolvable:$true] %s26
      %29 = dma.hbm_to_vmem [thread:$0]  %s25, 64, %s27, [#allocation3]
    $region9: #{_linear_clamp_call.1} parent=1 // pred_fallthru
      _
    // Predicated region
    $region10: #{_linear_clamp_call.1} parent=1 // pred_check
      _
    $region11: #{_linear_clamp_call.1} parent=1 // pred_check_branch
      %31 = sbr.rel (0) target = $region13
    $region12: #{_linear_clamp_call.1} parent=1 // pred_region
      %33 = dma.done [#allocation5], 16
    $region13: #{_linear_clamp_call.1} parent=1 // pred_fallthru
      _
    // Predicated region
    $region14: #{_linear_clamp_call.1} parent=1 // pred_check
      _
    $region15: #{_linear_clamp_call.1} parent=1 // pred_check_branch
      %35 = sbr.rel (0) target = $region17
    $region16: #{_linear_clamp_call.1} parent=1 // pred_region
      %37 = dma.done [#allocation3], 64
    $region17: #{_linear_clamp_call.1} parent=1 // pred_fallthru
      _
    %38 = sfence
    %v39 = vld [vmem:[#allocation6] sm:$0xf]
    %s40 = sld [smem:[#allocation2]]
    %v41 = vstv %s40
    %v42 = vmul.f32 %v41, %v39
    %v44 = vrot.slane %v42, 5
    %v46 = vadd.f32 %v39, %v44
    %s47 = sld [smem:[#allocation2 + $0x1]]
    %v48 = vstv %s47
    %v49 = vmul.f32 %v48, %v39
    %v51 = vrot.slane %v49, 6
    %v53 = vadd.f32 %v46, %v51
    %s54 = sld [smem:[#allocation2 + $0x2]]
    %v55 = vstv %s54
    %v56 = vmul.f32 %v55, %v39
    %v58 = vrot.slane %v56, 7
    %v60 = vadd.f32 %v53, %v58
    %v61 = vmax.f32 %v60, -18.24
    %v62 = vmin.f32 %v61, 82.796
    %vm63 = vcmask 60419
    %64 = vst.msk [vmem:[#allocation7 - $0x3] sm:$0x8] %vm63, %v62
    // Predicated region
    $region18: #{_linear_clamp_call.1} parent=1 // pred_check
      _
    $region19: #{_linear_clamp_call.1} parent=1 // pred_check_branch
      %66 = sbr.rel (0) target = $region21
    $region20: #{_linear_clamp_call.1} parent=1 // pred_region
      %68 = vsyncadd [#allocation4], 0
      %s70 = sshll.u32 [#allocation7], 4
      %s71 = int_to_ptr.vmem [resolvable:$true] %s70
      %s72 = sshll.u32 %s2, 4
      %s73 = int_to_ptr.hbm [resolvable:$true] %s72
      %75 = dma.vmem_to_hbm [thread:$0]  %s71, 16, %s73, [#allocation4]
    $region21: #{_linear_clamp_call.1} parent=1 // pred_fallthru
      _
    // Predicated region
    $region22: #{_linear_clamp_call.1} parent=1 // pred_check
      _
    $region23: #{_linear_clamp_call.1} parent=1 // pred_check_branch
      %77 = sbr.rel (0) target = $region25
    $region24: #{_linear_clamp_call.1} parent=1 // pred_region
      %79 = dma.done [#allocation4], 16
    $region25: #{_linear_clamp_call.1} parent=1 // pred_fallthru
      _
    %80 = vsyncpa [#allocation3], 1
    %81 = vsyncpa [#allocation4], 1
    %82 = vsyncpa [#allocation5], 1

</llo_original>
